<compile_context>
chip_gen: v7x
topology: tpu7x:2x2x1
jax: 0.10.0
libtpu: 0.0.40
codegen_flags: <defaults>
</compile_context>

<pallas_src>
import copy

import jax
import jax.numpy as jnp
from jax.experimental import pallas as pl
from jax.experimental.pallas import tpu as pltpu


LANE = 128
SUBLANE = 8
MAX_TILE_B = 256


def _round_up(x, m):
    return ((x + m - 1) // m) * m


# ----------------------------------------------------------------------------
# Kernels (weights already [in_pad, out_pad]; no transpose inside the kernel)
# ----------------------------------------------------------------------------
def _linear_kernel(x_ref, w_ref, o_ref):
    o_ref[...] = jnp.dot(
        x_ref[...], w_ref[...], preferred_element_type=jnp.float32
    ).astype(o_ref.dtype)


def _affine_kernel(x_ref, w_ref, b_ref, o_ref):
    y = jnp.dot(x_ref[...], w_ref[...], preferred_element_type=jnp.float32)
    o_ref[...] = (y + b_ref[...]).astype(o_ref.dtype)


def _mlp2_kernel(x_ref, w1_ref, b1_ref, w2_ref, b2_ref, o_ref):
    h = jnp.tanh(
        jnp.dot(x_ref[...], w1_ref[...], preferred_element_type=jnp.float32)
        + b1_ref[...])
    y = jnp.dot(h.astype(w2_ref.dtype), w2_ref[...],
                preferred_element_type=jnp.float32) + b2_ref[...]
    o_ref[...] = y.astype(o_ref.dtype)


def _mlp4_kernel(x_ref, w1_ref, b1_ref, w2_ref, b2_ref, w3_ref, b3_ref,
                 w4_ref, b4_ref, o_ref):
    h = jnp.tanh(
        jnp.dot(x_ref[...], w1_ref[...], preferred_element_type=jnp.float32)
        + b1_ref[...])
    h = jnp.tanh(
        jnp.dot(h.astype(w2_ref.dtype), w2_ref[...],
                preferred_element_type=jnp.float32) + b2_ref[...])
    h = jnp.tanh(
        jnp.dot(h.astype(w3_ref.dtype), w3_ref[...],
                preferred_element_type=jnp.float32) + b3_ref[...])
    y = jnp.dot(h.astype(w4_ref.dtype), w4_ref[...],
                preferred_element_type=jnp.float32) + b4_ref[...]
    o_ref[...] = y.astype(o_ref.dtype)


# ----------------------------------------------------------------------------
# Batched, lane-padded pallas_call wrapper
# ----------------------------------------------------------------------------
def _batched_call(kernel, x, padded_params, in_pad, out_pad, out_feat):
    B, F = x.shape
    tile_b = min(MAX_TILE_B, _round_up(B, SUBLANE))
    b_pad = _round_up(B, tile_b)

    # Zero-pad x to (b_pad, in_pad); padded columns contribute 0 to the dot,
    # padded rows are sliced away below.
    x_p = jnp.zeros((b_pad, in_pad), jnp.float32).at[:B, :F].set(
        x.astype(jnp.float32))

    in_specs = [pl.BlockSpec((tile_b, in_pad), lambda i: (i, 0))]
    # Weights / biases: constant block index -> resident in VMEM, no re-DMA.
    in_specs += [pl.BlockSpec(p.shape, lambda i: (0, 0)) for p in padded_params]

    out = pl.pallas_call(
        kernel,
        out_shape=jax.ShapeDtypeStruct((b_pad, out_pad), jnp.float32),
        grid_spec=pltpu.PrefetchScalarGridSpec(
            num_scalar_prefetch=0,
            grid=(b_pad // tile_b,),
            in_specs=in_specs,
            out_specs=pl.BlockSpec((tile_b, out_pad), lambda i: (i, 0)),
        ),
        compiler_params=pltpu.CompilerParams(
            dimension_semantics=("parallel",)),
    )(x_p, *padded_params)

    return out[:B, :out_feat]


# ----------------------------------------------------------------------------
# Parameter construction / padding
# ----------------------------------------------------------------------------
class TransformConst:
    def __init__(self, xform_type, in_feat=32, out_feat=64,
                 num_layers=2, begin=0, end=0):
        self.xform_type = xform_type
        self.in_feat = in_feat
        self.out_feat = out_feat
        self.num_layers = num_layers
        self.begin = begin
        self.end = end


def _init_linear_params(key, in_f, out_f, bias=True):
    # Deterministic init mimicking nn.Linear's uniform(-1/sqrt(in), 1/sqrt(in)).
    kw, kb = jax.random.split(key)
    bound = 1.0 / float(in_f) ** 0.5
    w = jax.random.uniform(kw, (out_f, in_f), jnp.float32, -bound, bound)
    if not bias:
        return (w,)
    b = jax.random.uniform(kb, (out_f,), jnp.float32, -bound, bound)
    return (w, b)


def _pad_weight_t(w, in_pad, out_pad):
    # w is PyTorch-convention [out_f, in_f]; store transposed+padded
    # [in_pad, out_pad] with zeros in the padding.
    out_f, in_f = w.shape
    return jnp.zeros((in_pad, out_pad), w.dtype).at[:in_f, :out_f].set(w.T)


def _pad_bias(b, out_pad):
    return jnp.zeros((1, out_pad), b.dtype).at[0, :b.shape[0]].set(b)


class Transform:
    def __init__(self, const, key):
        self.const = copy.deepcopy(const)
        self.params = self._construct_params(key)       # reference (PT layout)
        self.padded_params, self._dims_pad = self._pad_params()

    def _layer_dims(self):
        c = self.const
        if c.xform_type in ('linear', 'affine'):
            return [c.in_feat, c.out_feat]
        if c.xform_type == 'nonlinear':
            if c.num_layers == 2:
                hid = (c.in_feat + c.out_feat) // 2
                return [c.in_feat, hid, c.out_feat]
            if c.num_layers == 4:
                d = (c.out_feat - c.in_feat) // 4
                f = c.in_feat
                return [f, f + d, f + 2 * d, f + 3 * d, c.out_feat]
            raise AssertionError(
                f'Not implemented num_layers {c.num_layers}')
        return None

    def _construct_params(self, key):
        c = self.const
        if c.xform_type == 'linear':
            return _init_linear_params(key, c.in_feat, c.out_feat, bias=False)
        if c.xform_type == 'affine':
            return _init_linear_params(key, c.in_feat, c.out_feat, bias=True)
        if c.xform_type in ('select', 'identity'):
            return None
        if c.xform_type == 'nonlinear':
            dims = self._layer_dims()
            n = len(dims) - 1
            keys = jax.random.split(key, n)
            params = ()
            for i in range(n):
                params = params + _init_linear_params(
                    keys[i], dims[i], dims[i + 1])
            return params
        raise AssertionError(f'Not implemented xform_type {c.xform_type}')

    def _pad_params(self):
        dims = self._layer_dims()
        if dims is None or self.params is None:
            return None, None
        dims_pad = [_round_up(d, LANE) for d in dims]
        padded = []
        if self.const.xform_type == 'linear':
            padded.append(_pad_weight_t(self.params[0], dims_pad[0], dims_pad[1]))
        else:
            n = len(dims) - 1
            for i in range(n):
                w, b = self.params[2 * i], self.params[2 * i + 1]
                padded.append(_pad_weight_t(w, dims_pad[i], dims_pad[i + 1]))
                padded.append(_pad_bias(b, dims_pad[i + 1]))
        return tuple(padded), dims_pad

    def __call__(self, x):
        c = self.const
        if c.xform_type == 'select':
            # Pure slicing; no compute -> plain JAX glue.
            return x[:, c.begin:c.end + 1]
        if c.xform_type == 'identity':
            return x
        if c.xform_type == 'linear':
            kernel = _linear_kernel
        elif c.xform_type == 'affine':
            kernel = _affine_kernel
        elif c.num_layers == 2:
            kernel = _mlp2_kernel
        else:
            kernel = _mlp4_kernel
        return _batched_call(kernel, x, self.padded_params,
                             self._dims_pad[0], self._dims_pad[-1],
                             c.out_feat)


# ----------------------------------------------------------------------------
# Reference (pure JAX) for verification
# ----------------------------------------------------------------------------
def _ref_forward(transform, x):
    c = transform.const
    if c.xform_type == 'select':
        return x[:, c.begin:c.end + 1]
    if c.xform_type == 'identity':
        return x
    p = transform.params
    if c.xform_type == 'linear':
        return x @ p[0].T
    if c.xform_type == 'affine':
        return x @ p[0].T + p[1]
    h = x
    n_layers = len(p) // 2
    for i in range(n_layers):
        w, b = p[2 * i], p[2 * i + 1]
        h = h @ w.T + b
        if i < n_layers - 1:
            h = jnp.tanh(h)
    return h


if __name__ == "__main__":
    key = jax.random.PRNGKey(0)
    k_x, k_xb, k_lin, k_aff, k_nl2, k_nl4 = jax.random.split(key, 6)

    B, in_feat, out_feat = 8, 32, 64
    x = jax.random.normal(k_x, (B, in_feat), jnp.float32)
    x_big = jax.random.normal(k_xb, (300, in_feat), jnp.float32)  # multi-tile grid

    cases = [
        (Transform(TransformConst('linear', in_feat, out_feat), k_lin), x),
        (Transform(TransformConst('affine', in_feat, out_feat), k_aff), x),
        (Transform(TransformConst('nonlinear', in_feat, out_feat, num_layers=2), k_nl2), x),
        (Transform(TransformConst('nonlinear', in_feat, out_feat, num_layers=2), k_nl2), x_big),
        (Transform(TransformConst('nonlinear', in_feat, out_feat, num_layers=4), k_nl4), x),
        (Transform(TransformConst('select', in_feat, out_feat, begin=4, end=11), k_x), x),
        (Transform(TransformConst('identity', in_feat, out_feat), k_x), x),
    ]

    ok = True
    for t, xin in cases:
        y = jax.block_until_ready(t(xin))
        y_ref = _ref_forward(t, xin)
        if y.shape != y_ref.shape or not jnp.allclose(y, y_ref, atol=1e-4, rtol=1e-4):
            ok = False
            print(f"MISMATCH in xform_type={t.const.xform_type} "
                  f"num_layers={getattr(t.const, 'num_layers', None)} "
                  f"B={xin.shape[0]}")

    if ok:
        print("KERNEL_OK")
</pallas_src>

<mosaic_0001>
module attributes {stable_mosaic.version = 11 : i64} {
  func.func @_linear_kernel(%arg0: i32, %arg1: memref<8x128xf32, #tpu.memory_space<vmem>>, %arg2: memref<128x128xf32, #tpu.memory_space<vmem>>, %arg3: memref<8x128xf32, #tpu.memory_space<vmem>>) attributes {dimension_semantics = [#tpu.dimension_semantics<parallel>], iteration_bounds = array<i64: 1>, scalar_prefetch = 0 : i64, scratch_operands = 0 : i64, tpu.core_type = #tpu.core_type<tc>, window_params = [{transform_indices = @transform_0, window_bounds = array<i64: 8, 128>}, {pipeline_mode = #tpu.pipeline_mode<synchronous>, transform_indices = @transform_1, window_bounds = array<i64: 128, 128>}, {transform_indices = @transform_2, window_bounds = array<i64: 8, 128>}]} {
    %c0 = arith.constant 0 : index
    %c0_0 = arith.constant 0 : index
    %0 = vector.load %arg1[%c0, %c0_0] : memref<8x128xf32, #tpu.memory_space<vmem>>, vector<8x128xf32>
    %c0_1 = arith.constant 0 : index
    %c0_2 = arith.constant 0 : index
    %1 = vector.load %arg2[%c0_1, %c0_2] : memref<128x128xf32, #tpu.memory_space<vmem>>, vector<128x128xf32>
    %cst = arith.constant dense<0.000000e+00> : vector<8x128xf32>
    %2 = tpu.matmul %0, %1, %cst {dimension_numbers = #tpu.dot_dimension_numbers<[1], [0], [0], [1], [0, 0, 1, 1], [], []>} : vector<8x128xf32>, vector<128x128xf32>, vector<8x128xf32> -> vector<8x128xf32>
    %c0_3 = arith.constant 0 : index
    %c0_4 = arith.constant 0 : index
    %3 = vector.load %arg3[%c0_3, %c0_4] : memref<8x128xf32, #tpu.memory_space<vmem>>, vector<8x128xf32>
    tpu.vector_store %arg3[%c0_3, %c0_4], %2 {strides = array<i32>} : memref<8x128xf32, #tpu.memory_space<vmem>>, vector<8x128xf32>,
    return
  }
  func.func @transform_0(%arg0: i32) -> (i32, i32) {
    %c0_i32 = arith.constant 0 : i32
    %c0_i32_0 = arith.constant 0 : i32
    return %arg0, %c0_i32 : i32, i32
  }
  func.func @transform_1(%arg0: i32) -> (i32, i32) {
    %c0_i32 = arith.constant 0 : i32
    %c0_i32_0 = arith.constant 0 : i32
    %c0_i32_1 = arith.constant 0 : i32
    return %c0_i32, %c0_i32_0 : i32, i32
  }
  func.func @transform_2(%arg0: i32) -> (i32, i32) {
    %c0_i32 = arith.constant 0 : i32
    %c0_i32_0 = arith.constant 0 : i32
    return %arg0, %c0_i32 : i32, i32
  }
}

</mosaic_0001>

<llo_original>
// kernel: tpu_custom_call.1
$region0: #{tpu_custom_call.1}
  #allocation0 [shape = 'u32[]', space=smem, size = 0x4, offset = 0x4, fixed_abs, tag = 'smem constant byte address 0x4 - core index']
  #allocation1 [shape = 'u32[144,128]{1,0:T(1,128)}', space=vmem, size = 0x12000, scoped, tag = 'internal scratch']
  %s0 = inlined_call_operand.hbm [shape: f32[8,128], index: 0, kind: input, shape index: {}]
  %s1 = inlined_call_operand.hbm [shape: f32[128,128], index: 1, kind: input, shape index: {}]
  %s2 = inlined_call_operand.hbm [shape: f32[8,128], index: 2, kind: output, shape index: {}]
  %s3 = sld [smem:[#allocation0]]
  $region26: #{tpu_custom_call.1} parent=0
    _
  %s5 = ssub.s32 1, %s3
  %s6 = scalar_select 0, %s5, %s3
  $region1: #{tpu_custom_call.1} parent=0
    #allocation2 [shape = 'u8[4096]{0}', space=vmem, size = 0x1000, scoped, tag = 'input window, operand 0, single buffered']
    #allocation3 [shape = 's32[1]{0}', space=sflag, size = 0x4, scoped, tag = 'scoped memory for tpu_custom_call.1']
    #allocation4 [shape = 's32[1]{0}', space=sflag, size = 0x4, scoped, tag = 'scoped memory for tpu_custom_call.1']
    #allocation5 [shape = 'u8[65536]{0}', space=vmem, size = 0x10000, scoped, tag = 'input window, operand 1, single buffered']
    #allocation6 [shape = 's32[1]{0}', space=sflag, size = 0x4, scoped, tag = 'scoped memory for tpu_custom_call.1']
    #allocation7 [shape = 'u8[4096]{0}', space=vmem, size = 0x1000, scoped, tag = 'output window, operand 0, single buffered']
    %7 = vsyncpa [#allocation3], 0
    %8 = vsyncpa [#allocation6], 0
    %9 = vsyncpa [#allocation4], 0
    // Predicated region
    $region2: #{tpu_custom_call.1} parent=1 // pred_check
      _
    $region3: #{tpu_custom_call.1} parent=1 // pred_check_branch
      %11 = sbr.rel (0) target = $region5
    $region4: #{tpu_custom_call.1} parent=1 // pred_region
      %s13 = ssub.s32 128, 128
      %14 = vsyncadd [#allocation3], %s13
      %s16 = sshll.u32 [#allocation2], 4
      %s17 = int_to_ptr.vmem [resolvable:$true] %s16
      %19 = dma.hbm_to_vmem [thread:$0]  %s0, 128, %s17, [#allocation3]
    $region5: #{tpu_custom_call.1} parent=1 // pred_fallthru
      _
    // Predicated region
    $region6: #{tpu_custom_call.1} parent=1 // pred_check
      _
    $region7: #{tpu_custom_call.1} parent=1 // pred_check_branch
      %21 = sbr.rel (0) target = $region9
    $region8: #{tpu_custom_call.1} parent=1 // pred_region
      %s23 = ssub.s32 2048, 2048
      %24 = vsyncadd [#allocation6], %s23
      %s25 = sshll.u32 [#allocation5], 4
      %s26 = int_to_ptr.vmem [resolvable:$true] %s25
      %31 = dma.hbm_to_vmem [thread:$0]  %s1, 2048, %s26, [#allocation6], 128, 128, 8
    $region9: #{tpu_custom_call.1} parent=1 // pred_fallthru
      _
    // Predicated region
    $region10: #{tpu_custom_call.1} parent=1 // pred_check
      _
    $region11: #{tpu_custom_call.1} parent=1 // pred_check_branch
      %33 = sbr.rel (0) target = $region13
    $region12: #{tpu_custom_call.1} parent=1 // pred_region
      %34 = dma.done [#allocation3], 128
    $region13: #{tpu_custom_call.1} parent=1 // pred_fallthru
      _
    // Predicated region
    $region14: #{tpu_custom_call.1} parent=1 // pred_check
      _
    $region15: #{tpu_custom_call.1} parent=1 // pred_check_branch
      %36 = sbr.rel (0) target = $region17
    $region16: #{tpu_custom_call.1} parent=1 // pred_region
      %37 = dma.done [#allocation6], 2048
    $region17: #{tpu_custom_call.1} parent=1 // pred_fallthru
      _
    %v38 = vld [vmem:[#allocation2] sm:$0xff]
    %v39 = vld [vmem:[#allocation5] sm:$0xff]
    %v40 = vld [vmem:[#allocation5 + $0x8] sm:$0xff]
    %v41 = vld [vmem:[#allocation5 + $0x10] sm:$0xff]
    %v42 = vld [vmem:[#allocation5 + $0x18] sm:$0xff]
    %v43 = vld [vmem:[#allocation5 + $0x20] sm:$0xff]
    %v44 = vld [vmem:[#allocation5 + $0x28] sm:$0xff]
    %v45 = vld [vmem:[#allocation5 + $0x30] sm:$0xff]
    %v46 = vld [vmem:[#allocation5 + $0x38] sm:$0xff]
    %v47 = vld [vmem:[#allocation5 + $0x40] sm:$0xff]
    %v48 = vld [vmem:[#allocation5 + $0x48] sm:$0xff]
    %v49 = vld [vmem:[#allocation5 + $0x50] sm:$0xff]
    %v50 = vld [vmem:[#allocation5 + $0x58] sm:$0xff]
    %v51 = vld [vmem:[#allocation5 + $0x60] sm:$0xff]
    %v52 = vld [vmem:[#allocation5 + $0x68] sm:$0xff]
    %v53 = vld [vmem:[#allocation5 + $0x70] sm:$0xff]
    %v54 = vld [vmem:[#allocation5 + $0x78] sm:$0xff]
    %55 = vmatprep.subr.mxu0 0.0
    %56 = vmatpush1.msra.mxu0 %v39
    %57 = vmatprep.subr.mxu0 0.0
    %58 = vmatpush1.msra.mxu0 %v40
    %59 = vmatprep.subr.mxu0 0.0
    %60 = vmatpush1.msra.mxu0 %v41
    %61 = vmatprep.subr.mxu0 0.0
    %62 = vmatpush1.msra.mxu0 %v42
    %63 = vmatprep.subr.mxu0 0.0
    %64 = vmatpush1.msra.mxu0 %v43
    %65 = vmatprep.subr.mxu0 0.0
    %66 = vmatpush1.msra.mxu0 %v44
    %67 = vmatprep.subr.mxu0 0.0
    %68 = vmatpush1.msra.mxu0 %v45
    %69 = vmatprep.subr.mxu0 0.0
    %70 = vmatpush1.msra.mxu0 %v46
    %71 = vmatprep.subr.mxu0 0.0
    %72 = vmatpush1.msra.mxu0 %v47
    %73 = vmatprep.subr.mxu0 0.0
    %74 = vmatpush1.msra.mxu0 %v48
    %75 = vmatprep.subr.mxu0 0.0
    %76 = vmatpush1.msra.mxu0 %v49
    %77 = vmatprep.subr.mxu0 0.0
    %78 = vmatpush1.msra.mxu0 %v50
    %79 = vmatprep.subr.mxu0 0.0
    %80 = vmatpush1.msra.mxu0 %v51
    %81 = vmatprep.subr.mxu0 0.0
    %82 = vmatpush1.msra.mxu0 %v52
    %83 = vmatprep.subr.mxu0 0.0
    %84 = vmatpush1.msra.mxu0 %v53
    %85 = vmatprep.subr.mxu0 0.0
    %86 = vmatpush1.msra.mxu0 %v54
    %87 = vmatprep.subr.mxu0 0.0
    %88 = vmatpush1.msra.mxu0 0.0
    %89 = vmatprep.subr.mxu0 0.0
    %90 = vmatpush1.msra.mxu0 0.0
    %91 = vmatprep.subr.mxu0 0.0
    %92 = vmatpush1.msra.mxu0 0.0
    %93 = vmatprep.subr.mxu0 0.0
    %94 = vmatpush1.msra.mxu0 0.0
    %95 = vmatprep.subr.mxu0 0.0
    %96 = vmatpush1.msra.mxu0 0.0
    %97 = vmatprep.subr.mxu0 0.0
    %98 = vmatpush1.msra.mxu0 0.0
    %99 = vmatprep.subr.mxu0 0.0
    %100 = vmatpush1.msra.mxu0 0.0
    %101 = vmatprep.subr.mxu0 0.0
    %102 = vmatpush1.msra.mxu0 0.0
    %103 = vmatprep.subr.mxu0 0.0
    %104 = vmatpush1.msra.mxu0 0.0
    %105 = vmatprep.subr.mxu0 0.0
    %106 = vmatpush1.msra.mxu0 0.0
    %107 = vmatprep.subr.mxu0 0.0
    %108 = vmatpush1.msra.mxu0 0.0
    %109 = vmatprep.subr.mxu0 0.0
    %110 = vmatpush1.msra.mxu0 0.0
    %111 = vmatprep.subr.mxu0 0.0
    %112 = vmatpush1.msra.mxu0 0.0
    %113 = vmatprep.subr.mxu0 0.0
    %114 = vmatpush1.msra.mxu0 0.0
    %115 = vmatprep.subr.mxu0 0.0
    %116 = vmatpush1.msra.mxu0 0.0
    %117 = vmatprep.subr.mxu0 0.0
    %118 = vmatpush1.msra.mxu0 0.0
    %119 = vmatprep.mubr.f32.mxu0 0.0
    %120 = vmatmul.mubr.f32.gmra.mrb[0].mxu0 %v38
    %v121 = vpop.f32.mrb[0].mxu0
    %v122 = vadd.f32 0.0, %v121
    %v123 = vpop.f32.mrb[0].mxu0
    %124 = vdwg.mxu0
    %125 = vst [vmem:[#allocation7] sm:$0xff] %v122
    // Predicated region
    $region18: #{tpu_custom_call.1} parent=1 // pred_check
      _
    $region19: #{tpu_custom_call.1} parent=1 // pred_check_branch
      %127 = sbr.rel (0) target = $region21
    $region20: #{tpu_custom_call.1} parent=1 // pred_region
      %s129 = ssub.s32 128, 128
      %130 = vsyncadd [#allocation4], %s129
      %s132 = sshll.u32 [#allocation7], 4
      %s133 = int_to_ptr.vmem [resolvable:$true] %s132
      %135 = dma.vmem_to_hbm [thread:$0]  %s133, 128, %s2, [#allocation4]
    $region21: #{tpu_custom_call.1} parent=1 // pred_fallthru
      _
    // Predicated region
    $region22: #{tpu_custom_call.1} parent=1 // pred_check
      _
    $region23: #{tpu_custom_call.1} parent=1 // pred_check_branch
      %137 = sbr.rel (0) target = $region25
    $region24: #{tpu_custom_call.1} parent=1 // pred_region
      %138 = dma.done [#allocation4], 128
    $region25: #{tpu_custom_call.1} parent=1 // pred_fallthru
      _
    %139 = vsyncpa [#allocation3], 1
    %140 = vsyncpa [#allocation6], 1
    %141 = vsyncpa [#allocation4], 1

</llo_original>
